<compile_context>
chip_gen: v7x
topology: tpu7x:2x2x1
jax: 0.10.0
libtpu: 0.0.40
codegen_flags: <defaults>
</compile_context>

<pallas_src>
import functools

import jax
import jax.numpy as jnp
from jax.experimental import pallas as pl
from jax.experimental.pallas import tpu as pltpu

_LANE = 128
_SUBLANE = 8


def _round_up(x, m):
    return ((x + m - 1) // m) * m


def _vmem_capacity_bytes():
    """Physical VMEM of the local chip, with a conservative fallback (v7x per-TC)."""
    try:
        cap = int(getattr(pltpu.get_tpu_info(), "vmem_capacity_bytes"))
        if cap > 0:
            return cap
    except Exception:
        pass
    return 64 * 1024 * 1024


# --------------------------------------------------------------------------- #
# Kernels
# --------------------------------------------------------------------------- #
def _decoder_kernel(x_ref, w1_ref, b1_ref, w2_ref, b2_ref, out_ref):
    # x:(TM,L)  w1:(L,Hp)  b1:(1,Hp)  w2:(Hp,Op)  b2:(1,Op)  out:(TM,Op)
    x = x_ref[...].astype(w1_ref.dtype)  # in-kernel cast (VPU, hidden under MXU/DMA)
    h = jnp.dot(x, w1_ref[...], preferred_element_type=jnp.float32) + b1_ref[...]
    h = jnp.maximum(h, 0.0)              # bias + ReLU in f32 on the VPU
    y = jnp.dot(h.astype(w2_ref.dtype), w2_ref[...],
                preferred_element_type=jnp.float32) + b2_ref[...]
    out_ref[...] = y.astype(out_ref.dtype)


def _decoder_kernel_coltiled(x_ref, w1_ref, b1_ref, w2_ref, b2_ref, out_ref, h_ref):
    # Second grid axis tiles the output columns. The hidden activation is
    # computed once per batch tile (j == 0) into VMEM scratch and reused for
    # the remaining column tiles of that batch tile.
    @pl.when(pl.program_id(1) == 0)
    def _():
        x = x_ref[...].astype(w1_ref.dtype)
        h = jnp.dot(x, w1_ref[...], preferred_element_type=jnp.float32) + b1_ref[...]
        h_ref[...] = jnp.maximum(h, 0.0)

    y = jnp.dot(h_ref[...].astype(w2_ref.dtype), w2_ref[...],
                preferred_element_type=jnp.float32) + b2_ref[...]
    out_ref[...] = y.astype(out_ref.dtype)


# --------------------------------------------------------------------------- #
# Parameter preparation (one-time; NOT per forward call)
# --------------------------------------------------------------------------- #
def prepare_decoder_params(w1, b1, w2, b2, weight_dtype=jnp.float32):
    """Convert PyTorch nn.Linear layout (out,in) to kernel layout: (in,out)
    weights zero-padded so hidden/output dims are multiples of 128 (lane-dense
    intermediates and stores), biases as (1, dim) in f32. `weight_dtype` may be
    jnp.bfloat16 for the fast MXU path (f32 accumulation is kept in-kernel)."""
    H, L = w1.shape
    O = w2.shape[0]
    Hp = _round_up(H, _LANE)
    Op = _round_up(O, _LANE)

    w1_t = jnp.zeros((L, Hp), weight_dtype).at[:, :H].set(jnp.asarray(w1, weight_dtype).T)
    b1_p = jnp.zeros((1, Hp), jnp.float32).at[:, :H].set(jnp.asarray(b1, jnp.float32)[None, :])
    w2_t = jnp.zeros((Hp, Op), weight_dtype).at[:H, :O].set(jnp.asarray(w2, weight_dtype).T)
    b2_p = jnp.zeros((1, Op), jnp.float32).at[:, :O].set(jnp.asarray(b2, jnp.float32)[None, :])

    return dict(w1=w1_t, b1=b1_p, w2=w2_t, b2=b2_p,
                latent_dim=L, hidden_dim=H, output_dim=O,
                hidden_pad=Hp, output_pad=Op, weight_dtype=weight_dtype)


# --------------------------------------------------------------------------- #
# Forward
# --------------------------------------------------------------------------- #
def _pick_tm(B, block_rows):
    if B < 16:
        return B                                   # single block == full dim (always legal)
    tm = _round_up(pl.cdiv(B, 2), _SUBLANE)        # >= 2 grid steps -> both TCs on v7x
    if tm >= _LANE:
        tm = _round_up(tm, _LANE)                  # MXU-friendly tiles for large batches
    return min(tm, block_rows)


def _weight_spec(shape, index_map, single_buffer):
    if single_buffer:
        return pl.BlockSpec(shape, index_map, pipeline_mode=pl.Buffered(1))
    return pl.BlockSpec(shape, index_map)


def decoder_forward(params, x, *, block_rows=512, block_cols=None,
                    out_dtype=jnp.float32, single_buffer_weights=True,
                    weights_resident_budget=16 * 1024 * 1024):
    """x: (B, latent_dim). Returns (B, output_dim) in `out_dtype`."""
    B, L = x.shape
    assert L == params["latent_dim"]
    Hp, Op, O = params["hidden_pad"], params["output_pad"], params["output_dim"]
    w_dt = params["weight_dtype"]
    w_sz = jnp.dtype(w_dt).itemsize
    x_sz = jnp.dtype(x.dtype).itemsize
    o_sz = jnp.dtype(out_dtype).itemsize

    tm = _pick_tm(B, block_rows)
    grid_b = pl.cdiv(B, tm)

    # Tile the output columns when the resident fc2 weight would not comfortably
    # fit VMEM (bounds per-step footprint; important on v7x's 64 MiB VMEM).
    if block_cols is None and Hp * Op * w_sz > weights_resident_budget:
        block_cols = 512
    use_cols = block_cols is not None and block_cols < Op

    if not use_cols:
        kernel = _decoder_kernel
        grid = (grid_b,)
        in_specs = [
            pl.BlockSpec((tm, L), lambda i: (i, 0)),                       # x tile marches
            _weight_spec((L, Hp), lambda i: (0, 0), single_buffer_weights),  # resident
            _weight_spec((1, Hp), lambda i: (0, 0), single_buffer_weights),
            _weight_spec((Hp, Op), lambda i: (0, 0), single_buffer_weights),
            _weight_spec((1, Op), lambda i: (0, 0), single_buffer_weights),
        ]
        out_specs = pl.BlockSpec((tm, Op), lambda i: (i, 0))
        scratch_shapes = ()
        dim_sem = ("parallel",)
        wbuf = 1 if single_buffer_weights else 2
        need = (wbuf * ((L * Hp + Hp * Op) * w_sz + (Hp + Op) * 4)
                + 2 * tm * L * x_sz + 2 * tm * Op * o_sz
                + tm * (Hp + Op) * 4 + tm * Hp * w_sz)
        bytes_acc = (B * L * x_sz + (L * Hp + Hp * Op) * w_sz + (Hp + Op) * 4
                     + B * Op * o_sz)
    else:
        tn = min(_round_up(block_cols, _LANE), Op)
        grid_n = pl.cdiv(Op, tn)
        kernel = _decoder_kernel_coltiled
        grid = (grid_b, grid_n)
        in_specs = [
            pl.BlockSpec((tm, L), lambda i, j: (i, 0)),
            _weight_spec((L, Hp), lambda i, j: (0, 0), single_buffer_weights),
            _weight_spec((1, Hp), lambda i, j: (0, 0), single_buffer_weights),
            pl.BlockSpec((Hp, tn), lambda i, j: (0, j)),   # marches over columns
            pl.BlockSpec((1, tn), lambda i, j: (0, j)),
        ]
        out_specs = pl.BlockSpec((tm, tn), lambda i, j: (i, j))
        scratch_shapes = [pltpu.VMEM((tm, Hp), jnp.float32)]
        dim_sem = ("parallel", "arbitrary")
        wbuf = 1 if single_buffer_weights else 2
        need = (wbuf * (L * Hp * w_sz + Hp * 4)
                + 2 * (Hp * tn * w_sz + tn * 4)
                + 2 * tm * L * x_sz + 2 * tm * tn * o_sz
                + tm * Hp * 4 + tm * tn * 4 + tm * Hp * w_sz)
        bytes_acc = (B * L * x_sz + (L * Hp + grid_b * Hp * Op) * w_sz
                     + (Hp + grid_b * Op) * 4 + B * Op * o_sz)

    flops = 2 * B * (L * Hp + Hp * Op)
    cost = pl.CostEstimate(flops=int(flops), transcendentals=0,
                           bytes_accessed=int(bytes_acc))

    cap = _vmem_capacity_bytes()
    vmem_limit = int(min(max(2 * need, 32 * 1024 * 1024), int(0.75 * cap)))
    vmem_limit = max(vmem_limit, int(1.25 * need) + (1 << 20))  # never below footprint

    out = pl.pallas_call(
        kernel,
        out_shape=jax.ShapeDtypeStruct((B, Op), out_dtype),
        grid=grid,
        in_specs=in_specs,
        out_specs=out_specs,
        scratch_shapes=scratch_shapes,
        compiler_params=pltpu.CompilerParams(
            dimension_semantics=dim_sem, vmem_limit_bytes=vmem_limit),
        cost_estimate=cost,
    )(x, params["w1"], params["b1"], params["w2"], params["b2"])

    return out if Op == O else out[:, :O]


def _forward_with_fallback(params, x, **kw):
    """Jit + run; if single-buffered resident weights are not supported by the
    installed jax, silently retry with default double-buffering."""
    try:
        fn = jax.jit(functools.partial(decoder_forward, params, **kw))
        return jax.block_until_ready(fn(x))
    except Exception:
        fn = jax.jit(functools.partial(decoder_forward, params,
                                       single_buffer_weights=False, **kw))
        return jax.block_until_ready(fn(x))


def _init_linear(key, out_features, in_features):
    # Mimics PyTorch nn.Linear default init (uniform +/- 1/sqrt(in_features)).
    k_w, k_b = jax.random.split(key)
    bound = 1.0 / jnp.sqrt(in_features)
    w = jax.random.uniform(k_w, (out_features, in_features), jnp.float32, -bound, bound)
    b = jax.random.uniform(k_b, (out_features,), jnp.float32, -bound, bound)
    return w, b


if __name__ == "__main__":
    keys = jax.random.split(jax.random.PRNGKey(0), 8)

    # ---- Test 1: f32 path, small shapes, strict tolerance -------------------
    latent, hidden, out_dim, batch = 16, 32, 24, 8
    x = jax.random.normal(keys[0], (batch, latent), jnp.float32)
    w1, b1 = _init_linear(keys[1], hidden, latent)
    w2, b2 = _init_linear(keys[2], out_dim, hidden)
    ref = jnp.maximum(x @ w1.T + b1, 0.0) @ w2.T + b2

    p_f32 = prepare_decoder_params(w1, b1, w2, b2, weight_dtype=jnp.float32)
    y = _forward_with_fallback(p_f32, x)
    assert y.shape == (batch, out_dim)
    assert jnp.allclose(y, ref, atol=1e-5, rtol=1e-5)

    # ---- Test 2: bf16 weight path, ragged batch, >= 2 grid steps ------------
    xb = jax.random.normal(keys[3], (20, latent), jnp.float32)
    refb = jnp.maximum(xb @ w1.T + b1, 0.0) @ w2.T + b2
    p_bf16 = prepare_decoder_params(w1, b1, w2, b2, weight_dtype=jnp.bfloat16)
    yb = _forward_with_fallback(p_bf16, xb)
    assert yb.shape == (20, out_dim)
    assert jnp.allclose(yb, refb, atol=3e-2, rtol=3e-2)

    # ---- Test 3: output-column-tiled path (2-D grid + VMEM scratch for h) ---
    hidden3, out3, batch3 = 256, 384, 40
    w1c, b1c = _init_linear(keys[4], hidden3, latent)
    w2c, b2c = _init_linear(keys[5], out3, hidden3)
    xc = jax.random.normal(keys[6], (batch3, latent), jnp.float32)
    refc = jnp.maximum(xc @ w1c.T + b1c, 0.0) @ w2c.T + b2c
    p_col = prepare_decoder_params(w1c, b1c, w2c, b2c, weight_dtype=jnp.float32)
    yc = _forward_with_fallback(p_col, xc, block_cols=128)
    assert yc.shape == (batch3, out3)
    assert jnp.allclose(yc, refc, atol=5e-4, rtol=5e-4)

    print("KERNEL_OK")
</pallas_src>

<mosaic_0001>
module attributes {stable_mosaic.version = 11 : i64} {
  func.func @_decoder_kernel(%arg0: i32, %arg1: memref<8x16xf32, #tpu.memory_space<vmem>>, %arg2: memref<16x128xf32, #tpu.memory_space<vmem>>, %arg3: memref<1x128xf32, #tpu.memory_space<vmem>>, %arg4: memref<128x128xf32, #tpu.memory_space<vmem>>, %arg5: memref<1x128xf32, #tpu.memory_space<vmem>>, %arg6: memref<8x128xf32, #tpu.memory_space<vmem>>) attributes {dimension_semantics = [#tpu.dimension_semantics<parallel>], iteration_bounds = array<i64: 1>, scalar_prefetch = 0 : i64, scratch_operands = 0 : i64, tpu.core_type = #tpu.core_type<tc>, window_params = [{transform_indices = @transform_0, window_bounds = array<i64: 8, 16>}, {pipeline_mode = #tpu.pipeline_mode<synchronous>, transform_indices = @transform_1, window_bounds = array<i64: 16, 128>}, {pipeline_mode = #tpu.pipeline_mode<synchronous>, transform_indices = @transform_2, window_bounds = array<i64: 1, 128>}, {pipeline_mode = #tpu.pipeline_mode<synchronous>, transform_indices = @transform_3, window_bounds = array<i64: 128, 128>}, {pipeline_mode = #tpu.pipeline_mode<synchronous>, transform_indices = @transform_4, window_bounds = array<i64: 1, 128>}, {transform_indices = @transform_5, window_bounds = array<i64: 8, 128>}]} {
    %c0 = arith.constant 0 : index
    %c0_0 = arith.constant 0 : index
    %0 = vector.load %arg1[%c0, %c0_0] : memref<8x16xf32, #tpu.memory_space<vmem>>, vector<8x16xf32>
    %c0_1 = arith.constant 0 : index
    %c0_2 = arith.constant 0 : index
    %1 = vector.load %arg2[%c0_1, %c0_2] : memref<16x128xf32, #tpu.memory_space<vmem>>, vector<16x128xf32>
    %cst = arith.constant dense<0.000000e+00> : vector<8x128xf32>
    %2 = tpu.matmul %0, %1, %cst {dimension_numbers = #tpu.dot_dimension_numbers<[1], [0], [0], [1], [0, 0, 1, 1], [], []>} : vector<8x16xf32>, vector<16x128xf32>, vector<8x128xf32> -> vector<8x128xf32>
    %c0_3 = arith.constant 0 : index
    %c0_4 = arith.constant 0 : index
    %3 = vector.load %arg3[%c0_3, %c0_4] : memref<1x128xf32, #tpu.memory_space<vmem>>, vector<1x128xf32>
    %4 = vector.broadcast %3 : vector<1x128xf32> to vector<8x128xf32>
    %5 = arith.addf %2, %4 : vector<8x128xf32>
    %cst_5 = arith.constant 0.000000e+00 : f32
    %6 = vector.broadcast %cst_5 : f32 to vector<8x128xf32>
    %7 = arith.maximumf %5, %6 : vector<8x128xf32>
    %c0_6 = arith.constant 0 : index
    %c0_7 = arith.constant 0 : index
    %8 = vector.load %arg4[%c0_6, %c0_7] : memref<128x128xf32, #tpu.memory_space<vmem>>, vector<128x128xf32>
    %cst_8 = arith.constant dense<0.000000e+00> : vector<8x128xf32>
    %9 = tpu.matmul %7, %8, %cst_8 {dimension_numbers = #tpu.dot_dimension_numbers<[1], [0], [0], [1], [0, 0, 1, 1], [], []>} : vector<8x128xf32>, vector<128x128xf32>, vector<8x128xf32> -> vector<8x128xf32>
    %c0_9 = arith.constant 0 : index
    %c0_10 = arith.constant 0 : index
    %10 = vector.load %arg5[%c0_9, %c0_10] : memref<1x128xf32, #tpu.memory_space<vmem>>, vector<1x128xf32>
    %11 = vector.broadcast %10 : vector<1x128xf32> to vector<8x128xf32>
    %12 = arith.addf %9, %11 : vector<8x128xf32>
    %c0_11 = arith.constant 0 : index
    %c0_12 = arith.constant 0 : index
    %13 = vector.load %arg6[%c0_11, %c0_12] : memref<8x128xf32, #tpu.memory_space<vmem>>, vector<8x128xf32>
    tpu.vector_store %arg6[%c0_11, %c0_12], %12 {strides = array<i32>} : memref<8x128xf32, #tpu.memory_space<vmem>>, vector<8x128xf32>,
    return
  }
  func.func @transform_0(%arg0: i32) -> (i32, i32) {
    %c0_i32 = arith.constant 0 : i32
    %c0_i32_0 = arith.constant 0 : i32
    return %arg0, %c0_i32 : i32, i32
  }
  func.func @transform_1(%arg0: i32) -> (i32, i32) {
    %c0_i32 = arith.constant 0 : i32
    %c0_i32_0 = arith.constant 0 : i32
    %c0_i32_1 = arith.constant 0 : i32
    return %c0_i32, %c0_i32_0 : i32, i32
  }
  func.func @transform_2(%arg0: i32) -> (i32, i32) {
    %c0_i32 = arith.constant 0 : i32
    %c0_i32_0 = arith.constant 0 : i32
    %c0_i32_1 = arith.constant 0 : i32
    return %c0_i32, %c0_i32_0 : i32, i32
  }
  func.func @transform_3(%arg0: i32) -> (i32, i32) {
    %c0_i32 = arith.constant 0 : i32
    %c0_i32_0 = arith.constant 0 : i32
    %c0_i32_1 = arith.constant 0 : i32
    return %c0_i32, %c0_i32_0 : i32, i32
  }
  func.func @transform_4(%arg0: i32) -> (i32, i32) {
    %c0_i32 = arith.constant 0 : i32
    %c0_i32_0 = arith.constant 0 : i32
    %c0_i32_1 = arith.constant 0 : i32
    return %c0_i32, %c0_i32_0 : i32, i32
  }
  func.func @transform_5(%arg0: i32) -> (i32, i32) {
    %c0_i32 = arith.constant 0 : i32
    %c0_i32_0 = arith.constant 0 : i32
    return %arg0, %c0_i32 : i32, i32
  }
}

module attributes {stable_mosaic.version = 11 : i64} {
  func.func @_decoder_kernel(%arg0: i32, %arg1: memref<8x16xf32, #tpu.memory_space<vmem>>, %arg2: memref<16x128xf32, #tpu.memory_space<vmem>>, %arg3: memref<1x128xf32, #tpu.memory_space<vmem>>, %arg4: memref<128x128xf32, #tpu.memory_space<vmem>>, %arg5: memref<1x128xf32, #tpu.memory_space<vmem>>, %arg6: memref<8x128xf32, #tpu.memory_space<vmem>>) attributes {dimension_semantics = [#tpu.dimension_semantics<parallel>], iteration_bounds = array<i64: 1>, scalar_prefetch = 0 : i64, scratch_operands = 0 : i64, tpu.core_type = #tpu.core_type<tc>, window_params = [{transform_indices = @transform_0, window_bounds = array<i64: 8, 16>}, {pipeline_mode = #tpu.pipeline_mode<synchronous>, transform_indices = @transform_1, window_bounds = array<i64: 16, 128>}, {pipeline_mode = #tpu.pipeline_mode<synchronous>, transform_indices = @transform_2, window_bounds = array<i64: 1, 128>}, {pipeline_mode = #tpu.pipeline_mode<synchronous>, transform_indices = @transform_3, window_bounds = array<i64: 128, 128>}, {pipeline_mode = #tpu.pipeline_mode<synchronous>, transform_indices = @transform_4, window_bounds = array<i64: 1, 128>}, {transform_indices = @transform_5, window_bounds = array<i64: 8, 128>}]} {
    %c0 = arith.constant 0 : index
    %c0_0 = arith.constant 0 : index
    %0 = vector.load %arg1[%c0, %c0_0] : memref<8x16xf32, #tpu.memory_space<vmem>>, vector<8x16xf32>
    %c0_1 = arith.constant 0 : index
    %c0_2 = arith.constant 0 : index
    %1 = vector.load %arg2[%c0_1, %c0_2] : memref<16x128xf32, #tpu.memory_space<vmem>>, vector<16x128xf32>
    %cst = arith.constant dense<0.000000e+00> : vector<8x128xf32>
    %2 = tpu.matmul %0, %1, %cst {dimension_numbers = #tpu.dot_dimension_numbers<[1], [0], [0], [1], [0, 0, 1, 1], [], []>} : vector<8x16xf32>, vector<16x128xf32>, vector<8x128xf32> -> vector<8x128xf32>
    %c0_3 = arith.constant 0 : index
    %c0_4 = arith.constant 0 : index
    %3 = vector.load %arg3[%c0_3, %c0_4] : memref<1x128xf32, #tpu.memory_space<vmem>>, vector<1x128xf32>
    %4 = vector.broadcast %3 : vector<1x128xf32> to vector<8x128xf32>
    %5 = arith.addf %2, %4 : vector<8x128xf32>
    %cst_5 = arith.constant 0.000000e+00 : f32
    %6 = vector.broadcast %cst_5 : f32 to vector<8x128xf32>
    %7 = arith.maximumf %5, %6 : vector<8x128xf32>
    %c0_6 = arith.constant 0 : index
    %c0_7 = arith.constant 0 : index
    %8 = vector.load %arg4[%c0_6, %c0_7] : memref<128x128xf32, #tpu.memory_space<vmem>>, vector<128x128xf32>
    %cst_8 = arith.constant dense<0.000000e+00> : vector<8x128xf32>
    %9 = tpu.matmul %7, %8, %cst_8 {dimension_numbers = #tpu.dot_dimension_numbers<[1], [0], [0], [1], [0, 0, 1, 1], [], []>} : vector<8x128xf32>, vector<128x128xf32>, vector<8x128xf32> -> vector<8x128xf32>
    %c0_9 = arith.constant 0 : index
    %c0_10 = arith.constant 0 : index
    %10 = vector.load %arg5[%c0_9, %c0_10] : memref<1x128xf32, #tpu.memory_space<vmem>>, vector<1x128xf32>
    %11 = vector.broadcast %10 : vector<1x128xf32> to vector<8x128xf32>
    %12 = arith.addf %9, %11 : vector<8x128xf32>
    %c0_11 = arith.constant 0 : index
    %c0_12 = arith.constant 0 : index
    %13 = vector.load %arg6[%c0_11, %c0_12] : memref<8x128xf32, #tpu.memory_space<vmem>>, vector<8x128xf32>
    tpu.vector_store %arg6[%c0_11, %c0_12], %12 {strides = array<i32>} : memref<8x128xf32, #tpu.memory_space<vmem>>, vector<8x128xf32>,
    return
  }
  func.func @transform_0(%arg0: i32) -> (i32, i32) {
    %c0_i32 = arith.constant 0 : i32
    %c0_i32_0 = arith.constant 0 : i32
    return %arg0, %c0_i32 : i32, i32
  }
  func.func @transform_1(%arg0: i32) -> (i32, i32) {
    %c0_i32 = arith.constant 0 : i32
    %c0_i32_0 = arith.constant 0 : i32
    %c0_i32_1 = arith.constant 0 : i32
    return %c0_i32, %c0_i32_0 : i32, i32
  }
  func.func @transform_2(%arg0: i32) -> (i32, i32) {
    %c0_i32 = arith.constant 0 : i32
    %c0_i32_0 = arith.constant 0 : i32
    %c0_i32_1 = arith.constant 0 : i32
    return %c0_i32, %c0_i32_0 : i32, i32
  }
  func.func @transform_3(%arg0: i32) -> (i32, i32) {
    %c0_i32 = arith.constant 0 : i32
    %c0_i32_0 = arith.constant 0 : i32
    %c0_i32_1 = arith.constant 0 : i32
    return %c0_i32, %c0_i32_0 : i32, i32
  }
  func.func @transform_4(%arg0: i32) -> (i32, i32) {
    %c0_i32 = arith.constant 0 : i32
    %c0_i32_0 = arith.constant 0 : i32
    %c0_i32_1 = arith.constant 0 : i32
    return %c0_i32, %c0_i32_0 : i32, i32
  }
  func.func @transform_5(%arg0: i32) -> (i32, i32) {
    %c0_i32 = arith.constant 0 : i32
    %c0_i32_0 = arith.constant 0 : i32
    return %arg0, %c0_i32 : i32, i32
  }
}

</mosaic_0001>

<llo_original>
// kernel: decoder_forward.1
$region0: #{decoder_forward.1}
  #allocation0 [shape = 'u32[]', space=smem, size = 0x4, offset = 0x4, fixed_abs, tag = 'smem constant byte address 0x4 - core index']
  #allocation1 [shape = 'u32[144,128]{1,0:T(1,128)}', space=vmem, size = 0x12000, scoped, tag = 'internal scratch']
  %s0 = inlined_call_operand.hbm [shape: f32[8,16], index: 0, kind: input, shape index: {}]
  %s1 = inlined_call_operand.hbm [shape: f32[16,128], index: 1, kind: input, shape index: {}]
  %s2 = inlined_call_operand.vmem [shape: f32[1,128], index: 2, kind: input, shape index: {}]
  %s3 = inlined_call_operand.hbm [shape: f32[128,128], index: 3, kind: input, shape index: {}]
  %s4 = inlined_call_operand.vmem [shape: f32[1,128], index: 4, kind: input, shape index: {}]
  %s5 = inlined_call_operand.hbm [shape: f32[8,128], index: 5, kind: output, shape index: {}]
  %s6 = sld [smem:[#allocation0]]
  $region42: #{decoder_forward.1} parent=0
    _
  %s8 = ssub.s32 1, %s6
  %s9 = scalar_select 0, %s8, %s6
  $region1: #{decoder_forward.1} parent=0
    #allocation2 [shape = 'u8[4096]{0}', space=vmem, size = 0x1000, scoped, tag = 'input window, operand 0, single buffered']
    #allocation3 [shape = 's32[1]{0}', space=sflag, size = 0x4, scoped, tag = 'scoped memory for decoder_forward.1']
    #allocation4 [shape = 's32[1]{0}', space=sflag, size = 0x4, scoped, tag = 'scoped memory for decoder_forward.1']
    #allocation5 [shape = 'u8[8192]{0}', space=vmem, size = 0x2000, scoped, tag = 'input window, operand 1, single buffered']
    #allocation6 [shape = 's32[1]{0}', space=sflag, size = 0x4, scoped, tag = 'scoped memory for decoder_forward.1']
    #allocation7 [shape = 'u8[65536]{0}', space=vmem, size = 0x10000, scoped, tag = 'input window, operand 3, single buffered']
    #allocation8 [shape = 'u8[4096]{0}', space=vmem, size = 0x1000, scoped, tag = 'output window, operand 0, single buffered']
    %10 = vsyncpa [#allocation3], 0
    %11 = vsyncpa [#allocation6], 0
    %12 = vsyncpa [#allocation4], 0
    // Predicated region
    $region2: #{decoder_forward.1} parent=1 // pred_check
      _
    $region3: #{decoder_forward.1} parent=1 // pred_check_branch
      %14 = sbr.rel (0) target = $region5
    $region4: #{decoder_forward.1} parent=1 // pred_region
      %s16 = ssub.s32 128, 128
      %17 = vsyncadd [#allocation3], %s16
      %s19 = sshll.u32 [#allocation2], 4
      %s20 = int_to_ptr.vmem [resolvable:$true] %s19
      %22 = dma.hbm_to_vmem [thread:$0]  %s0, 128, %s20, [#allocation3]
    $region5: #{decoder_forward.1} parent=1 // pred_fallthru
      _
    // Predicated region
    $region6: #{decoder_forward.1} parent=1 // pred_check
      _
    $region7: #{decoder_forward.1} parent=1 // pred_check_branch
      %24 = sbr.rel (0) target = $region9
    $region8: #{decoder_forward.1} parent=1 // pred_region
      %s26 = ssub.s32 256, 256
      %27 = vsyncadd [#allocation6], %s26
      %s28 = sshll.u32 [#allocation5], 4
      %s29 = int_to_ptr.vmem [resolvable:$true] %s28
      %34 = dma.hbm_to_vmem [thread:$0]  %s1, 256, %s29, [#allocation6], 128, 128, 8
    $region9: #{decoder_forward.1} parent=1 // pred_fallthru
      _
    // Predicated region
    $region10: #{decoder_forward.1} parent=1 // pred_check
      _
    $region11: #{decoder_forward.1} parent=1 // pred_check_branch
      %36 = sbr.rel (0) target = $region13
    $region12: #{decoder_forward.1} parent=1 // pred_region
      _
    $region13: #{decoder_forward.1} parent=1 // pred_fallthru
      _
    // Predicated region
    $region14: #{decoder_forward.1} parent=1 // pred_check
      _
    $region15: #{decoder_forward.1} parent=1 // pred_check_branch
      %38 = sbr.rel (0) target = $region17
    $region16: #{decoder_forward.1} parent=1 // pred_region
      %s40 = ssub.s32 2048, 2048
      %41 = vsyncadd [#allocation6], %s40
      %s42 = sshll.u32 [#allocation7], 4
      %s43 = int_to_ptr.vmem [resolvable:$true] %s42
      %48 = dma.hbm_to_vmem [thread:$0]  %s3, 2048, %s43, [#allocation6], 128, 128, 8
    $region17: #{decoder_forward.1} parent=1 // pred_fallthru
      _
    // Predicated region
    $region18: #{decoder_forward.1} parent=1 // pred_check
      _
    $region19: #{decoder_forward.1} parent=1 // pred_check_branch
      %50 = sbr.rel (0) target = $region21
    $region20: #{decoder_forward.1} parent=1 // pred_region
      _
    $region21: #{decoder_forward.1} parent=1 // pred_fallthru
      _
    // Predicated region
    $region22: #{decoder_forward.1} parent=1 // pred_check
      _
    $region23: #{decoder_forward.1} parent=1 // pred_check_branch
      %52 = sbr.rel (0) target = $region25
    $region24: #{decoder_forward.1} parent=1 // pred_region
      %53 = dma.done [#allocation3], 128
    $region25: #{decoder_forward.1} parent=1 // pred_fallthru
      _
    // Predicated region
    $region26: #{decoder_forward.1} parent=1 // pred_check
      _
    $region27: #{decoder_forward.1} parent=1 // pred_check_branch
      %55 = sbr.rel (0) target = $region29
    $region28: #{decoder_forward.1} parent=1 // pred_region
      %56 = dma.done [#allocation6], 256
    $region29: #{decoder_forward.1} parent=1 // pred_fallthru
      _
    // Predicated region
    $region30: #{decoder_forward.1} parent=1 // pred_check
      _
    $region31: #{decoder_forward.1} parent=1 // pred_check_branch
      %58 = sbr.rel (0) target = $region33
    $region32: #{decoder_forward.1} parent=1 // pred_region
      %59 = dma.done [#allocation6], 2048
    $region33: #{decoder_forward.1} parent=1 // pred_fallthru
      _
    %v60 = vld [vmem:[#allocation2] sm:$0xff]
    %v61 = vld [vmem:[#allocation5] sm:$0xff]
    %v62 = vld [vmem:[#allocation5 + $0x8] sm:$0xff]
    %v63 = vld [vmem:[%s2] sm:$0x1]
    %v65 = vlaneseq
    %v66 = vshrl.u32 %v65, 7
    %v67 = vsub.s32 0, %v66
    %v68 = vrot.slane %v63, %v67
    %vm70 = vcmask 130048
    %v72 = vsel %vm70, %v60, 0
    %74 = vmatprep.subr.mxu0 0.0
    %75 = vmatpush1.msra.mxu0 %v61
    %76 = vmatprep.subr.mxu0 0.0
    %77 = vmatpush1.msra.mxu0 %v62
    %78 = vmatprep.subr.mxu0 0.0
    %79 = vmatpush1.msra.mxu0 0.0
    %80 = vmatprep.subr.mxu0 0.0
    %81 = vmatpush1.msra.mxu0 0.0
    %82 = vmatprep.subr.mxu0 0.0
    %83 = vmatpush1.msra.mxu0 0.0
    %84 = vmatprep.subr.mxu0 0.0
    %85 = vmatpush1.msra.mxu0 0.0
    %86 = vmatprep.subr.mxu0 0.0
    %87 = vmatpush1.msra.mxu0 0.0
    %88 = vmatprep.subr.mxu0 0.0
    %89 = vmatpush1.msra.mxu0 0.0
    %90 = vmatprep.subr.mxu0 0.0
    %91 = vmatpush1.msra.mxu0 0.0
    %92 = vmatprep.subr.mxu0 0.0
    %93 = vmatpush1.msra.mxu0 0.0
    %94 = vmatprep.subr.mxu0 0.0
    %95 = vmatpush1.msra.mxu0 0.0
    %96 = vmatprep.subr.mxu0 0.0
    %97 = vmatpush1.msra.mxu0 0.0
    %98 = vmatprep.subr.mxu0 0.0
    %99 = vmatpush1.msra.mxu0 0.0
    %100 = vmatprep.subr.mxu0 0.0
    %101 = vmatpush1.msra.mxu0 0.0
    %102 = vmatprep.subr.mxu0 0.0
    %103 = vmatpush1.msra.mxu0 0.0
    %104 = vmatprep.subr.mxu0 0.0
    %105 = vmatpush1.msra.mxu0 0.0
    %106 = vmatprep.subr.mxu0 0.0
    %107 = vmatpush1.msra.mxu0 0.0
    %108 = vmatprep.subr.mxu0 0.0
    %109 = vmatpush1.msra.mxu0 0.0
    %110 = vmatprep.subr.mxu0 0.0
    %111 = vmatpush1.msra.mxu0 0.0
    %112 = vmatprep.subr.mxu0 0.0
    %113 = vmatpush1.msra.mxu0 0.0
    %114 = vmatprep.subr.mxu0 0.0
    %115 = vmatpush1.msra.mxu0 0.0
    %116 = vmatprep.subr.mxu0 0.0
    %117 = vmatpush1.msra.mxu0 0.0
    %118 = vmatprep.subr.mxu0 0.0
    %119 = vmatpush1.msra.mxu0 0.0
    %120 = vmatprep.subr.mxu0 0.0
    %121 = vmatpush1.msra.mxu0 0.0
    %122 = vmatprep.subr.mxu0 0.0
    %123 = vmatpush1.msra.mxu0 0.0
    %124 = vmatprep.subr.mxu0 0.0
    %125 = vmatpush1.msra.mxu0 0.0
    %126 = vmatprep.subr.mxu0 0.0
    %127 = vmatpush1.msra.mxu0 0.0
    %128 = vmatprep.subr.mxu0 0.0
    %129 = vmatpush1.msra.mxu0 0.0
    %130 = vmatprep.subr.mxu0 0.0
    %131 = vmatpush1.msra.mxu0 0.0
    %132 = vmatprep.subr.mxu0 0.0
    %133 = vmatpush1.msra.mxu0 0.0
    %134 = vmatprep.subr.mxu0 0.0
    %135 = vmatpush1.msra.mxu0 0.0
    %136 = vmatprep.subr.mxu0 0.0
    %137 = vmatpush1.msra.mxu0 0.0
    %138 = vmatprep.mubr.f32.mxu0 0.0
    %139 = vmatmul.mubr.f32.gmra.mrb[0].mxu0 %v72
    %v140 = vpop.f32.mrb[0].mxu0
    %v141 = vadd.f32 %v68, %v140
    %v142 = vpop.f32.mrb[0].mxu0
    %143 = vdwg.mxu0
    %v144 = vmax.f32 %v141, 0.0
    %v145 = vld [vmem:[#allocation7] sm:$0xff]
    %v146 = vld [vmem:[#allocation7 + $0x8] sm:$0xff]
    %v147 = vld [vmem:[#allocation7 + $0x10] sm:$0xff]
    %v148 = vld [vmem:[#allocation7 + $0x18] sm:$0xff]
    %v149 = vld [vmem:[#allocation7 + $0x20] sm:$0xff]
    %v150 = vld [vmem:[#allocation7 + $0x28] sm:$0xff]
    %v151 = vld [vmem:[#allocation7 + $0x30] sm:$0xff]
    %v152 = vld [vmem:[#allocation7 + $0x38] sm:$0xff]
    %v153 = vld [vmem:[#allocation7 + $0x40] sm:$0xff]
    %v154 = vld [vmem:[#allocation7 + $0x48] sm:$0xff]
    %v155 = vld [vmem:[#allocation7 + $0x50] sm:$0xff]
    %v156 = vld [vmem:[#allocation7 + $0x58] sm:$0xff]
    %v157 = vld [vmem:[#allocation7 + $0x60] sm:$0xff]
    %v158 = vld [vmem:[#allocation7 + $0x68] sm:$0xff]
    %v159 = vld [vmem:[#allocation7 + $0x70] sm:$0xff]
    %v160 = vld [vmem:[#allocation7 + $0x78] sm:$0xff]
    %v161 = vld [vmem:[%s4] sm:$0x1]
    %v163 = vlaneseq
    %v164 = vshrl.u32 %v163, 7
    %v165 = vsub.s32 0, %v164
    %v166 = vrot.slane %v161, %v165
    %168 = vmatprep.subr.mxu0 0.0
    %169 = vmatpush1.msra.mxu0 %v145
    %170 = vmatprep.subr.mxu0 0.0
    %171 = vmatpush1.msra.mxu0 %v146
    %172 = vmatprep.subr.mxu0 0.0
    %173 = vmatpush1.msra.mxu0 %v147
    %174 = vmatprep.subr.mxu0 0.0
    %175 = vmatpush1.msra.mxu0 %v148
    %176 = vmatprep.subr.mxu0 0.0
    %177 = vmatpush1.msra.mxu0 %v149
    %178 = vmatprep.subr.mxu0 0.0
    %179 = vmatpush1.msra.mxu0 %v150
    %180 = vmatprep.subr.mxu0 0.0
    %181 = vmatpush1.msra.mxu0 %v151
    %182 = vmatprep.subr.mxu0 0.0
    %183 = vmatpush1.msra.mxu0 %v152
    %184 = vmatprep.subr.mxu0 0.0
    %185 = vmatpush1.msra.mxu0 %v153
    %186 = vmatprep.subr.mxu0 0.0
    %187 = vmatpush1.msra.mxu0 %v154
    %188 = vmatprep.subr.mxu0 0.0
    %189 = vmatpush1.msra.mxu0 %v155
    %190 = vmatprep.subr.mxu0 0.0
    %191 = vmatpush1.msra.mxu0 %v156
    %192 = vmatprep.subr.mxu0 0.0
    %193 = vmatpush1.msra.mxu0 %v157
    %194 = vmatprep.subr.mxu0 0.0
    %195 = vmatpush1.msra.mxu0 %v158
    %196 = vmatprep.subr.mxu0 0.0
    %197 = vmatpush1.msra.mxu0 %v159
    %198 = vmatprep.subr.mxu0 0.0
    %199 = vmatpush1.msra.mxu0 %v160
    %200 = vmatprep.subr.mxu0 0.0
    %201 = vmatpush1.msra.mxu0 0.0
    %202 = vmatprep.subr.mxu0 0.0
    %203 = vmatpush1.msra.mxu0 0.0
    %204 = vmatprep.subr.mxu0 0.0
    %205 = vmatpush1.msra.mxu0 0.0
    %206 = vmatprep.subr.mxu0 0.0
    %207 = vmatpush1.msra.mxu0 0.0
    %208 = vmatprep.subr.mxu0 0.0
    %209 = vmatpush1.msra.mxu0 0.0
    %210 = vmatprep.subr.mxu0 0.0
    %211 = vmatpush1.msra.mxu0 0.0
    %212 = vmatprep.subr.mxu0 0.0
    %213 = vmatpush1.msra.mxu0 0.0
    %214 = vmatprep.subr.mxu0 0.0
    %215 = vmatpush1.msra.mxu0 0.0
    %216 = vmatprep.subr.mxu0 0.0
    %217 = vmatpush1.msra.mxu0 0.0
    %218 = vmatprep.subr.mxu0 0.0
    %219 = vmatpush1.msra.mxu0 0.0
    %220 = vmatprep.subr.mxu0 0.0
    %221 = vmatpush1.msra.mxu0 0.0
    %222 = vmatprep.subr.mxu0 0.0
    %223 = vmatpush1.msra.mxu0 0.0
    %224 = vmatprep.subr.mxu0 0.0
    %225 = vmatpush1.msra.mxu0 0.0
    %226 = vmatprep.subr.mxu0 0.0
    %227 = vmatpush1.msra.mxu0 0.0
    %228 = vmatprep.subr.mxu0 0.0
    %229 = vmatpush1.msra.mxu0 0.0
    %230 = vmatprep.subr.mxu0 0.0
    %231 = vmatpush1.msra.mxu0 0.0
    %232 = vmatprep.mubr.f32.mxu0 0.0
    %233 = vmatmul.mubr.f32.gmra.mrb[0].mxu0 %v144
    %v234 = vpop.f32.mrb[0].mxu0
    %v235 = vadd.f32 %v166, %v234
    %v236 = vpop.f32.mrb[0].mxu0
    %237 = vdwg.mxu0
    %238 = vst [vmem:[#allocation8] sm:$0xff] %v235
    // Predicated region
    $region34: #{decoder_forward.1} parent=1 // pred_check
      _
    $region35: #{decoder_forward.1} parent=1 // pred_check_branch
      %240 = sbr.rel (0) target = $region37
    $region36: #{decoder_forward.1} parent=1 // pred_region
      %s242 = ssub.s32 128, 128
      %243 = vsyncadd [#allocation4], %s242
      %s245 = sshll.u32 [#allocation8], 4
      %s246 = int_to_ptr.vmem [resolvable:$true] %s245
      %248 = dma.vmem_to_hbm [thread:$0]  %s246, 128, %s5, [#allocation4]
    $region37: #{decoder_forward.1} parent=1 // pred_fallthru
      _
    // Predicated region
    $region38: #{decoder_forward.1} parent=1 // pred_check
      _
    $region39: #{decoder_forward.1} parent=1 // pred_check_branch
      %250 = sbr.rel (0) target = $region41
    $region40: #{decoder_forward.1} parent=1 // pred_region
      %251 = dma.done [#allocation4], 128
    $region41: #{decoder_forward.1} parent=1 // pred_fallthru
      _
    %252 = vsyncpa [#allocation3], 1
    %253 = vsyncpa [#allocation6], 1
    %254 = vsyncpa [#allocation4], 1

// kernel: decoder_forward.1
$region0: #{decoder_forward.1}
  #allocation0 [shape = 'u32[]', space=smem, size = 0x4, offset = 0x4, fixed_abs, tag = 'smem constant byte address 0x4 - core index']
  #allocation1 [shape = 'u32[144,128]{1,0:T(1,128)}', space=vmem, size = 0x12000, scoped, tag = 'internal scratch']
  %s0 = inlined_call_operand.hbm [shape: f32[8,16], index: 0, kind: input, shape index: {}]
  %s1 = inlined_call_operand.hbm [shape: f32[16,128], index: 1, kind: input, shape index: {}]
  %s2 = inlined_call_operand.vmem [shape: f32[1,128], index: 2, kind: input, shape index: {}]
  %s3 = inlined_call_operand.hbm [shape: f32[128,128], index: 3, kind: input, shape index: {}]
  %s4 = inlined_call_operand.vmem [shape: f32[1,128], index: 4, kind: input, shape index: {}]
  %s5 = inlined_call_operand.hbm [shape: f32[8,128], index: 5, kind: output, shape index: {}]
  %s6 = sld [smem:[#allocation0]]
  $region42: #{decoder_forward.1} parent=0
    _
  %s8 = ssub.s32 1, %s6
  %s9 = scalar_select 0, %s8, %s6
  $region1: #{decoder_forward.1} parent=0
    #allocation2 [shape = 'u8[4096]{0}', space=vmem, size = 0x1000, scoped, tag = 'input window, operand 0, single buffered']
    #allocation3 [shape = 's32[1]{0}', space=sflag, size = 0x4, scoped, tag = 'scoped memory for decoder_forward.1']
    #allocation4 [shape = 's32[1]{0}', space=sflag, size = 0x4, scoped, tag = 'scoped memory for decoder_forward.1']
    #allocation5 [shape = 'u8[8192]{0}', space=vmem, size = 0x2000, scoped, tag = 'input window, operand 1, single buffered']
    #allocation6 [shape = 's32[1]{0}', space=sflag, size = 0x4, scoped, tag = 'scoped memory for decoder_forward.1']
    #allocation7 [shape = 'u8[65536]{0}', space=vmem, size = 0x10000, scoped, tag = 'input window, operand 3, single buffered']
    #allocation8 [shape = 'u8[4096]{0}', space=vmem, size = 0x1000, scoped, tag = 'output window, operand 0, single buffered']
    %10 = vsyncpa [#allocation3], 0
    %11 = vsyncpa [#allocation6], 0
    %12 = vsyncpa [#allocation4], 0
    // Predicated region
    $region2: #{decoder_forward.1} parent=1 // pred_check
      _
    $region3: #{decoder_forward.1} parent=1 // pred_check_branch
      %14 = sbr.rel (0) target = $region5
    $region4: #{decoder_forward.1} parent=1 // pred_region
      %s16 = ssub.s32 128, 128
      %17 = vsyncadd [#allocation3], %s16
      %s19 = sshll.u32 [#allocation2], 4
      %s20 = int_to_ptr.vmem [resolvable:$true] %s19
      %22 = dma.hbm_to_vmem [thread:$0]  %s0, 128, %s20, [#allocation3]
    $region5: #{decoder_forward.1} parent=1 // pred_fallthru
      _
    // Predicated region
    $region6: #{decoder_forward.1} parent=1 // pred_check
      _
    $region7: #{decoder_forward.1} parent=1 // pred_check_branch
      %24 = sbr.rel (0) target = $region9
    $region8: #{decoder_forward.1} parent=1 // pred_region
      %s26 = ssub.s32 256, 256
      %27 = vsyncadd [#allocation6], %s26
      %s28 = sshll.u32 [#allocation5], 4
      %s29 = int_to_ptr.vmem [resolvable:$true] %s28
      %34 = dma.hbm_to_vmem [thread:$0]  %s1, 256, %s29, [#allocation6], 128, 128, 8
    $region9: #{decoder_forward.1} parent=1 // pred_fallthru
      _
    // Predicated region
    $region10: #{decoder_forward.1} parent=1 // pred_check
      _
    $region11: #{decoder_forward.1} parent=1 // pred_check_branch
      %36 = sbr.rel (0) target = $region13
    $region12: #{decoder_forward.1} parent=1 // pred_region
      _
    $region13: #{decoder_forward.1} parent=1 // pred_fallthru
      _
    // Predicated region
    $region14: #{decoder_forward.1} parent=1 // pred_check
      _
    $region15: #{decoder_forward.1} parent=1 // pred_check_branch
      %38 = sbr.rel (0) target = $region17
    $region16: #{decoder_forward.1} parent=1 // pred_region
      %s40 = ssub.s32 2048, 2048
      %41 = vsyncadd [#allocation6], %s40
      %s42 = sshll.u32 [#allocation7], 4
      %s43 = int_to_ptr.vmem [resolvable:$true] %s42
      %48 = dma.hbm_to_vmem [thread:$0]  %s3, 2048, %s43, [#allocation6], 128, 128, 8
    $region17: #{decoder_forward.1} parent=1 // pred_fallthru
      _
    // Predicated region
    $region18: #{decoder_forward.1} parent=1 // pred_check
      _
    $region19: #{decoder_forward.1} parent=1 // pred_check_branch
      %50 = sbr.rel (0) target = $region21
    $region20: #{decoder_forward.1} parent=1 // pred_region
      _
    $region21: #{decoder_forward.1} parent=1 // pred_fallthru
      _
    // Predicated region
    $region22: #{decoder_forward.1} parent=1 // pred_check
      _
    $region23: #{decoder_forward.1} parent=1 // pred_check_branch
      %52 = sbr.rel (0) target = $region25
    $region24: #{decoder_forward.1} parent=1 // pred_region
      %53 = dma.done [#allocation3], 128
    $region25: #{decoder_forward.1} parent=1 // pred_fallthru
      _
    // Predicated region
    $region26: #{decoder_forward.1} parent=1 // pred_check
      _
    $region27: #{decoder_forward.1} parent=1 // pred_check_branch
      %55 = sbr.rel (0) target = $region29
    $region28: #{decoder_forward.1} parent=1 // pred_region
      %56 = dma.done [#allocation6], 256
    $region29: #{decoder_forward.1} parent=1 // pred_fallthru
      _
    // Predicated region
    $region30: #{decoder_forward.1} parent=1 // pred_check
      _
    $region31: #{decoder_forward.1} parent=1 // pred_check_branch
      %58 = sbr.rel (0) target = $region33
    $region32: #{decoder_forward.1} parent=1 // pred_region
      %59 = dma.done [#allocation6], 2048
    $region33: #{decoder_forward.1} parent=1 // pred_fallthru
      _
    %v60 = vld [vmem:[#allocation2] sm:$0xff]
    %v61 = vld [vmem:[#allocation5] sm:$0xff]
    %v62 = vld [vmem:[#allocation5 + $0x8] sm:$0xff]
    %v63 = vld [vmem:[%s2] sm:$0x1]
    %v65 = vlaneseq
    %v66 = vshrl.u32 %v65, 7
    %v67 = vsub.s32 0, %v66
    %v68 = vrot.slane %v63, %v67
    %vm70 = vcmask 130048
    %v72 = vsel %vm70, %v60, 0
    %74 = vmatprep.subr.mxu0 0.0
    %75 = vmatpush1.msra.mxu0 %v61
    %76 = vmatprep.subr.mxu0 0.0
    %77 = vmatpush1.msra.mxu0 %v62
    %78 = vmatprep.subr.mxu0 0.0
    %79 = vmatpush1.msra.mxu0 0.0
    %80 = vmatprep.subr.mxu0 0.0
    %81 = vmatpush1.msra.mxu0 0.0
    %82 = vmatprep.subr.mxu0 0.0
    %83 = vmatpush1.msra.mxu0 0.0
    %84 = vmatprep.subr.mxu0 0.0
    %85 = vmatpush1.msra.mxu0 0.0
    %86 = vmatprep.subr.mxu0 0.0
    %87 = vmatpush1.msra.mxu0 0.0
    %88 = vmatprep.subr.mxu0 0.0
    %89 = vmatpush1.msra.mxu0 0.0
    %90 = vmatprep.subr.mxu0 0.0
    %91 = vmatpush1.msra.mxu0 0.0
    %92 = vmatprep.subr.mxu0 0.0
    %93 = vmatpush1.msra.mxu0 0.0
    %94 = vmatprep.subr.mxu0 0.0
    %95 = vmatpush1.msra.mxu0 0.0
    %96 = vmatprep.subr.mxu0 0.0
    %97 = vmatpush1.msra.mxu0 0.0
    %98 = vmatprep.subr.mxu0 0.0
    %99 = vmatpush1.msra.mxu0 0.0
    %100 = vmatprep.subr.mxu0 0.0
    %101 = vmatpush1.msra.mxu0 0.0
    %102 = vmatprep.subr.mxu0 0.0
    %103 = vmatpush1.msra.mxu0 0.0
    %104 = vmatprep.subr.mxu0 0.0
    %105 = vmatpush1.msra.mxu0 0.0
    %106 = vmatprep.subr.mxu0 0.0
    %107 = vmatpush1.msra.mxu0 0.0
    %108 = vmatprep.subr.mxu0 0.0
    %109 = vmatpush1.msra.mxu0 0.0
    %110 = vmatprep.subr.mxu0 0.0
    %111 = vmatpush1.msra.mxu0 0.0
    %112 = vmatprep.subr.mxu0 0.0
    %113 = vmatpush1.msra.mxu0 0.0
    %114 = vmatprep.subr.mxu0 0.0
    %115 = vmatpush1.msra.mxu0 0.0
    %116 = vmatprep.subr.mxu0 0.0
    %117 = vmatpush1.msra.mxu0 0.0
    %118 = vmatprep.subr.mxu0 0.0
    %119 = vmatpush1.msra.mxu0 0.0
    %120 = vmatprep.subr.mxu0 0.0
    %121 = vmatpush1.msra.mxu0 0.0
    %122 = vmatprep.subr.mxu0 0.0
    %123 = vmatpush1.msra.mxu0 0.0
    %124 = vmatprep.subr.mxu0 0.0
    %125 = vmatpush1.msra.mxu0 0.0
    %126 = vmatprep.subr.mxu0 0.0
    %127 = vmatpush1.msra.mxu0 0.0
    %128 = vmatprep.subr.mxu0 0.0
    %129 = vmatpush1.msra.mxu0 0.0
    %130 = vmatprep.subr.mxu0 0.0
    %131 = vmatpush1.msra.mxu0 0.0
    %132 = vmatprep.subr.mxu0 0.0
    %133 = vmatpush1.msra.mxu0 0.0
    %134 = vmatprep.subr.mxu0 0.0
    %135 = vmatpush1.msra.mxu0 0.0
    %136 = vmatprep.subr.mxu0 0.0
    %137 = vmatpush1.msra.mxu0 0.0
    %138 = vmatprep.mubr.f32.mxu0 0.0
    %139 = vmatmul.mubr.f32.gmra.mrb[0].mxu0 %v72
    %v140 = vpop.f32.mrb[0].mxu0
    %v141 = vadd.f32 %v68, %v140
    %v142 = vpop.f32.mrb[0].mxu0
    %143 = vdwg.mxu0
    %v144 = vmax.f32 %v141, 0.0
    %v145 = vld [vmem:[#allocation7] sm:$0xff]
    %v146 = vld [vmem:[#allocation7 + $0x8] sm:$0xff]
    %v147 = vld [vmem:[#allocation7 + $0x10] sm:$0xff]
    %v148 = vld [vmem:[#allocation7 + $0x18] sm:$0xff]
    %v149 = vld [vmem:[#allocation7 + $0x20] sm:$0xff]
    %v150 = vld [vmem:[#allocation7 + $0x28] sm:$0xff]
    %v151 = vld [vmem:[#allocation7 + $0x30] sm:$0xff]
    %v152 = vld [vmem:[#allocation7 + $0x38] sm:$0xff]
    %v153 = vld [vmem:[#allocation7 + $0x40] sm:$0xff]
    %v154 = vld [vmem:[#allocation7 + $0x48] sm:$0xff]
    %v155 = vld [vmem:[#allocation7 + $0x50] sm:$0xff]
    %v156 = vld [vmem:[#allocation7 + $0x58] sm:$0xff]
    %v157 = vld [vmem:[#allocation7 + $0x60] sm:$0xff]
    %v158 = vld [vmem:[#allocation7 + $0x68] sm:$0xff]
    %v159 = vld [vmem:[#allocation7 + $0x70] sm:$0xff]
    %v160 = vld [vmem:[#allocation7 + $0x78] sm:$0xff]
    %v161 = vld [vmem:[%s4] sm:$0x1]
    %v163 = vlaneseq
    %v164 = vshrl.u32 %v163, 7
    %v165 = vsub.s32 0, %v164
    %v166 = vrot.slane %v161, %v165
    %168 = vmatprep.subr.mxu0 0.0
    %169 = vmatpush1.msra.mxu0 %v145
    %170 = vmatprep.subr.mxu0 0.0
    %171 = vmatpush1.msra.mxu0 %v146
    %172 = vmatprep.subr.mxu0 0.0
    %173 = vmatpush1.msra.mxu0 %v147
    %174 = vmatprep.subr.mxu0 0.0
    %175 = vmatpush1.msra.mxu0 %v148
    %176 = vmatprep.subr.mxu0 0.0
    %177 = vmatpush1.msra.mxu0 %v149
    %178 = vmatprep.subr.mxu0 0.0
    %179 = vmatpush1.msra.mxu0 %v150
    %180 = vmatprep.subr.mxu0 0.0
    %181 = vmatpush1.msra.mxu0 %v151
    %182 = vmatprep.subr.mxu0 0.0
    %183 = vmatpush1.msra.mxu0 %v152
    %184 = vmatprep.subr.mxu0 0.0
    %185 = vmatpush1.msra.mxu0 %v153
    %186 = vmatprep.subr.mxu0 0.0
    %187 = vmatpush1.msra.mxu0 %v154
    %188 = vmatprep.subr.mxu0 0.0
    %189 = vmatpush1.msra.mxu0 %v155
    %190 = vmatprep.subr.mxu0 0.0
    %191 = vmatpush1.msra.mxu0 %v156
    %192 = vmatprep.subr.mxu0 0.0
    %193 = vmatpush1.msra.mxu0 %v157
    %194 = vmatprep.subr.mxu0 0.0
    %195 = vmatpush1.msra.mxu0 %v158
    %196 = vmatprep.subr.mxu0 0.0
    %197 = vmatpush1.msra.mxu0 %v159
    %198 = vmatprep.subr.mxu0 0.0
    %199 = vmatpush1.msra.mxu0 %v160
    %200 = vmatprep.subr.mxu0 0.0
    %201 = vmatpush1.msra.mxu0 0.0
    %202 = vmatprep.subr.mxu0 0.0
    %203 = vmatpush1.msra.mxu0 0.0
    %204 = vmatprep.subr.mxu0 0.0
    %205 = vmatpush1.msra.mxu0 0.0
    %206 = vmatprep.subr.mxu0 0.0
    %207 = vmatpush1.msra.mxu0 0.0
    %208 = vmatprep.subr.mxu0 0.0
    %209 = vmatpush1.msra.mxu0 0.0
    %210 = vmatprep.subr.mxu0 0.0
    %211 = vmatpush1.msra.mxu0 0.0
    %212 = vmatprep.subr.mxu0 0.0
    %213 = vmatpush1.msra.mxu0 0.0
    %214 = vmatprep.subr.mxu0 0.0
    %215 = vmatpush1.msra.mxu0 0.0
    %216 = vmatprep.subr.mxu0 0.0
    %217 = vmatpush1.msra.mxu0 0.0
    %218 = vmatprep.subr.mxu0 0.0
    %219 = vmatpush1.msra.mxu0 0.0
    %220 = vmatprep.subr.mxu0 0.0
    %221 = vmatpush1.msra.mxu0 0.0
    %222 = vmatprep.subr.mxu0 0.0
    %223 = vmatpush1.msra.mxu0 0.0
    %224 = vmatprep.subr.mxu0 0.0
    %225 = vmatpush1.msra.mxu0 0.0
    %226 = vmatprep.subr.mxu0 0.0
    %227 = vmatpush1.msra.mxu0 0.0
    %228 = vmatprep.subr.mxu0 0.0
    %229 = vmatpush1.msra.mxu0 0.0
    %230 = vmatprep.subr.mxu0 0.0
    %231 = vmatpush1.msra.mxu0 0.0
    %232 = vmatprep.mubr.f32.mxu0 0.0
    %233 = vmatmul.mubr.f32.gmra.mrb[0].mxu0 %v144
    %v234 = vpop.f32.mrb[0].mxu0
    %v235 = vadd.f32 %v166, %v234
    %v236 = vpop.f32.mrb[0].mxu0
    %237 = vdwg.mxu0
    %238 = vst [vmem:[#allocation8] sm:$0xff] %v235
    // Predicated region
    $region34: #{decoder_forward.1} parent=1 // pred_check
      _
    $region35: #{decoder_forward.1} parent=1 // pred_check_branch
      %240 = sbr.rel (0) target = $region37
    $region36: #{decoder_forward.1} parent=1 // pred_region
      %s242 = ssub.s32 128, 128
      %243 = vsyncadd [#allocation4], %s242
      %s245 = sshll.u32 [#allocation8], 4
      %s246 = int_to_ptr.vmem [resolvable:$true] %s245
      %248 = dma.vmem_to_hbm [thread:$0]  %s246, 128, %s5, [#allocation4]
    $region37: #{decoder_forward.1} parent=1 // pred_fallthru
      _
    // Predicated region
    $region38: #{decoder_forward.1} parent=1 // pred_check
      _
    $region39: #{decoder_forward.1} parent=1 // pred_check_branch
      %250 = sbr.rel (0) target = $region41
    $region40: #{decoder_forward.1} parent=1 // pred_region
      %251 = dma.done [#allocation4], 128
    $region41: #{decoder_forward.1} parent=1 // pred_fallthru
      _
    %252 = vsyncpa [#allocation3], 1
    %253 = vsyncpa [#allocation6], 1
    %254 = vsyncpa [#allocation4], 1

</llo_original>
